<compile_context>
chip_gen: v7x
topology: tpu7x:2x2x1
jax: 0.10.0
libtpu: 0.0.40
codegen_flags: <defaults>
</compile_context>

<pallas_src>
import math
from functools import partial

import jax
import jax.numpy as jnp
from jax.experimental import pallas as pl
from jax.experimental.pallas import tpu as pltpu

SUBLANE = 8  # f32 sublane grain


def _round_up(n, m):
    return ((n + m - 1) // m) * m


def _cdiv(a, b):
    return -(-a // b)


def actor_kernel(x_ref, w1_ref, b1_ref, w2_ref, b2_ref, wh_ref, bh_ref,
                 out_ref, *, action_dim):
    """One batch tile of the Actor forward.

    x: [TB, S], w1: [S, H], w2: [H, H], wh: [H, 2A], b*: [1, *],
    out: [TB, 2A] where cols [0, A) = mean and [A, 2A) = std.
    """
    slope = jnp.float32(0.01)          # F.leaky_relu default negative_slope
    wt = w1_ref.dtype                  # MXU operand dtype (f32, or bf16 via prep_params)

    x = x_ref[...].astype(wt)

    h1 = jnp.dot(x, w1_ref[...], preferred_element_type=jnp.float32) + b1_ref[...]
    h1 = jnp.maximum(h1, slope * h1)

    h2 = jnp.dot(h1.astype(wt), w2_ref[...],
                 preferred_element_type=jnp.float32) + b2_ref[...]
    h2 = jnp.maximum(h2, slope * h2)

    # Fused head: single MXU pass producing [mean | log_std].
    raw = jnp.dot(h2.astype(wt), wh_ref[...],
                  preferred_element_type=jnp.float32) + bh_ref[...]

    # exp only the std lanes; jnp.where is a true select, so exp overflow on the
    # mean lanes (if any) never propagates into the selected result.
    col = jax.lax.broadcasted_iota(jnp.int32, raw.shape, dimension=1)
    out = jnp.where(col >= action_dim, jnp.exp(raw), raw)

    out_ref[...] = out.astype(out_ref.dtype)


def xavier_uniform(key, fan_in, fan_out):
    # torch.nn.init.xavier_uniform_: U(-a, a), a = sqrt(6 / (fan_in + fan_out))
    a = math.sqrt(6.0 / (fan_in + fan_out))
    # stored as [in_features, out_features] (transposed vs torch's [out, in])
    return jax.random.uniform(key, (fan_in, fan_out), jnp.float32, -a, a)


def init_params(key, state_dim, hidden_dim, action_dim):
    """Logical parameters, matching the PyTorch module (biases init to 0)."""
    k1, k2, k3, k4 = jax.random.split(key, 4)
    return {
        "w1": xavier_uniform(k1, state_dim, hidden_dim),
        "b1": jnp.zeros((1, hidden_dim), jnp.float32),
        "w2": xavier_uniform(k2, hidden_dim, hidden_dim),
        "b2": jnp.zeros((1, hidden_dim), jnp.float32),
        "wm": xavier_uniform(k3, hidden_dim, action_dim),
        "bm": jnp.zeros((1, action_dim), jnp.float32),
        "ws": xavier_uniform(k4, hidden_dim, action_dim),
        "bs": jnp.zeros((1, action_dim), jnp.float32),
    }


def prep_params(params, dtype=jnp.float32):
    """Fuse the mean/std heads into one [H, 2A] matmul. Done ONCE.

    No feature-dim zero padding: the kernel is HBM-bound and padded weight bytes
    (~25x the real data at these shapes) dominate latency; the MXU handles
    partial tiles with huge slack. dtype=jnp.bfloat16 on v6e/v7x halves weight
    DMA bytes and enables the bf16 MXU path (activations are cast in-kernel;
    accumulation stays f32).
    """
    state_dim, hidden_dim = params["w1"].shape
    action_dim = params["wm"].shape[1]
    wh = jnp.concatenate([params["wm"], params["ws"]], axis=1)   # [H, 2A]
    bh = jnp.concatenate([params["bm"], params["bs"]], axis=1)   # [1, 2A]
    return {
        "w1": params["w1"].astype(dtype),
        "b1": params["b1"].astype(jnp.float32),
        "w2": params["w2"].astype(dtype),
        "b2": params["b2"].astype(jnp.float32),
        "wh": wh.astype(dtype),
        "bh": bh.astype(jnp.float32),
        "dims": (state_dim, hidden_dim, action_dim),
    }


def _choose_batch_tiling(B, max_batch_tile, megacore_split_rows):
    """Split the batch into equal sublane-rounded tiles.

    * Tile cap 2048: footprint at S=16, H=32, 2A=16 f32 is ~0.5 MiB double-buffered
      (x + out tiles) + ~7 KiB resident weights — far below every generation's
      scoped VMEM default. Bigger tiles amortize the ~0.35 us per grid step.
    * For mid/large batches use an even tile count >= 2 so v7x's second
      TensorCore gets work (no effect on 1-TC v5e/v6e beyond one extra step).
    * Padding waste is < SUBLANE rows per tile (never the old up-to-TB-1 rows).
    """
    B_sub = _round_up(B, SUBLANE)
    n_tiles = _cdiv(B_sub, max_batch_tile)
    if n_tiles == 1 and B_sub >= megacore_split_rows:
        n_tiles = 2
    if n_tiles > 1 and n_tiles % 2:
        n_tiles += 1
    TB = _round_up(_cdiv(B_sub, n_tiles), SUBLANE)
    B_pad = TB * n_tiles
    return TB, n_tiles, B_pad


def actor_forward(x, prepped, *, max_batch_tile=2048, megacore_split_rows=512):
    """x: [B, state_dim]; prepped: output of prep_params. Returns (mean, std)."""
    state_dim, hidden_dim, action_dim = prepped["dims"]
    out_dim = 2 * action_dim
    B = x.shape[0]

    TB, n_tiles, B_pad = _choose_batch_tiling(B, max_batch_tile, megacore_split_rows)

    x = x.astype(jnp.float32)
    x_p = x if B_pad == B else jnp.pad(x, ((0, B_pad - B), (0, 0)))  # batch rows only

    flops = 2 * B_pad * (state_dim * hidden_dim + hidden_dim * hidden_dim
                         + hidden_dim * out_dim)
    bytes_accessed = (
        x_p.size * x_p.dtype.itemsize
        + sum(prepped[k].size * prepped[k].dtype.itemsize
              for k in ("w1", "b1", "w2", "b2", "wh", "bh"))
        + B_pad * out_dim * 4
    )

    out = pl.pallas_call(
        partial(actor_kernel, action_dim=action_dim),
        out_shape=jax.ShapeDtypeStruct((B_pad, out_dim), jnp.float32),
        grid=(n_tiles,),
        in_specs=[
            pl.BlockSpec((TB, state_dim), lambda i: (i, 0)),       # x: tiled over batch
            pl.BlockSpec((state_dim, hidden_dim), lambda i: (0, 0)),   # weights/biases resident
            pl.BlockSpec((1, hidden_dim), lambda i: (0, 0)),
            pl.BlockSpec((hidden_dim, hidden_dim), lambda i: (0, 0)),
            pl.BlockSpec((1, hidden_dim), lambda i: (0, 0)),
            pl.BlockSpec((hidden_dim, out_dim), lambda i: (0, 0)),
            pl.BlockSpec((1, out_dim), lambda i: (0, 0)),
        ],
        out_specs=pl.BlockSpec((TB, out_dim), lambda i: (i, 0)),
        compiler_params=pltpu.CompilerParams(
            dimension_semantics=("parallel",),   # megacore sharding on v7x
        ),
        cost_estimate=pl.CostEstimate(
            flops=flops,
            transcendentals=B_pad * out_dim,
            bytes_accessed=bytes_accessed,
        ),
    )(x_p, prepped["w1"], prepped["b1"], prepped["w2"], prepped["b2"],
      prepped["wh"], prepped["bh"])

    mean = out[:B, :action_dim]
    std = out[:B, action_dim:]
    return mean, std


def reference_forward(x, params):
    """Pure-JAX reference matching the PyTorch forward (f32 math)."""
    lrelu = lambda v: jnp.where(v > 0, v, 0.01 * v)
    h1 = lrelu(x @ params["w1"] + params["b1"])
    h2 = lrelu(h1 @ params["w2"] + params["b2"])
    mean = h2 @ params["wm"] + params["bm"]
    std = jnp.exp(h2 @ params["ws"] + params["bs"])
    return mean, std


if __name__ == "__main__":
    state_dim, hidden_dim, action_dim = 16, 32, 8
    batch = 8

    key = jax.random.PRNGKey(0)
    kx, kp = jax.random.split(key)
    x = jax.random.normal(kx, (batch, state_dim), jnp.float32)

    params = init_params(kp, state_dim, hidden_dim, action_dim)
    prepped = prep_params(params)   # dtype=jnp.bfloat16 on v6e/v7x if ~1e-2 rtol is OK

    mean, std = actor_forward(x, prepped)
    jax.block_until_ready((mean, std))

    ref_mean, ref_std = reference_forward(x, params)
    assert mean.shape == (batch, action_dim) and std.shape == (batch, action_dim)
    assert jnp.allclose(mean, ref_mean, atol=1e-5, rtol=1e-5)
    assert jnp.allclose(std, ref_std, atol=1e-5, rtol=1e-5)

    print("KERNEL_OK")
</pallas_src>

<mosaic_0001>
module attributes {stable_mosaic.version = 11 : i64} {
  func.func @actor_kernel(%arg0: i32, %arg1: memref<8x16xf32, #tpu.memory_space<vmem>>, %arg2: memref<16x32xf32, #tpu.memory_space<vmem>>, %arg3: memref<1x32xf32, #tpu.memory_space<vmem>>, %arg4: memref<32x32xf32, #tpu.memory_space<vmem>>, %arg5: memref<1x32xf32, #tpu.memory_space<vmem>>, %arg6: memref<32x16xf32, #tpu.memory_space<vmem>>, %arg7: memref<1x16xf32, #tpu.memory_space<vmem>>, %arg8: memref<8x16xf32, #tpu.memory_space<vmem>>) attributes {dimension_semantics = [#tpu.dimension_semantics<parallel>], iteration_bounds = array<i64: 1>, scalar_prefetch = 0 : i64, scratch_operands = 0 : i64, tpu.core_type = #tpu.core_type<tc>, window_params = [{transform_indices = @transform_0, window_bounds = array<i64: 8, 16>}, {pipeline_mode = #tpu.pipeline_mode<synchronous>, transform_indices = @transform_1, window_bounds = array<i64: 16, 32>}, {pipeline_mode = #tpu.pipeline_mode<synchronous>, transform_indices = @transform_2, window_bounds = array<i64: 1, 32>}, {pipeline_mode = #tpu.pipeline_mode<synchronous>, transform_indices = @transform_3, window_bounds = array<i64: 32, 32>}, {pipeline_mode = #tpu.pipeline_mode<synchronous>, transform_indices = @transform_4, window_bounds = array<i64: 1, 32>}, {pipeline_mode = #tpu.pipeline_mode<synchronous>, transform_indices = @transform_5, window_bounds = array<i64: 32, 16>}, {pipeline_mode = #tpu.pipeline_mode<synchronous>, transform_indices = @transform_6, window_bounds = array<i64: 1, 16>}, {transform_indices = @transform_7, window_bounds = array<i64: 8, 16>}]} {
    %c0 = arith.constant 0 : index
    %c0_0 = arith.constant 0 : index
    %0 = vector.load %arg1[%c0, %c0_0] : memref<8x16xf32, #tpu.memory_space<vmem>>, vector<8x16xf32>
    %c0_1 = arith.constant 0 : index
    %c0_2 = arith.constant 0 : index
    %1 = vector.load %arg2[%c0_1, %c0_2] : memref<16x32xf32, #tpu.memory_space<vmem>>, vector<16x32xf32>
    %cst = arith.constant dense<0.000000e+00> : vector<8x32xf32>
    %2 = tpu.matmul %0, %1, %cst {dimension_numbers = #tpu.dot_dimension_numbers<[1], [0], [0], [1], [0, 0, 1, 1], [], []>} : vector<8x16xf32>, vector<16x32xf32>, vector<8x32xf32> -> vector<8x32xf32>
    %c0_3 = arith.constant 0 : index
    %c0_4 = arith.constant 0 : index
    %3 = vector.load %arg3[%c0_3, %c0_4] : memref<1x32xf32, #tpu.memory_space<vmem>>, vector<1x32xf32>
    %4 = vector.broadcast %3 : vector<1x32xf32> to vector<8x32xf32>
    %5 = arith.addf %2, %4 : vector<8x32xf32>
    %cst_5 = arith.constant 0.00999999977 : f32
    %6 = vector.broadcast %cst_5 : f32 to vector<8x32xf32>
    %7 = arith.mulf %6, %5 : vector<8x32xf32>
    %8 = arith.maximumf %5, %7 : vector<8x32xf32>
    %c0_6 = arith.constant 0 : index
    %c0_7 = arith.constant 0 : index
    %9 = vector.load %arg4[%c0_6, %c0_7] : memref<32x32xf32, #tpu.memory_space<vmem>>, vector<32x32xf32>
    %cst_8 = arith.constant dense<0.000000e+00> : vector<8x32xf32>
    %10 = tpu.matmul %8, %9, %cst_8 {dimension_numbers = #tpu.dot_dimension_numbers<[1], [0], [0], [1], [0, 0, 1, 1], [], []>} : vector<8x32xf32>, vector<32x32xf32>, vector<8x32xf32> -> vector<8x32xf32>
    %c0_9 = arith.constant 0 : index
    %c0_10 = arith.constant 0 : index
    %11 = vector.load %arg5[%c0_9, %c0_10] : memref<1x32xf32, #tpu.memory_space<vmem>>, vector<1x32xf32>
    %12 = vector.broadcast %11 : vector<1x32xf32> to vector<8x32xf32>
    %13 = arith.addf %10, %12 : vector<8x32xf32>
    %cst_11 = arith.constant 0.00999999977 : f32
    %14 = vector.broadcast %cst_11 : f32 to vector<8x32xf32>
    %15 = arith.mulf %14, %13 : vector<8x32xf32>
    %16 = arith.maximumf %13, %15 : vector<8x32xf32>
    %c0_12 = arith.constant 0 : index
    %c0_13 = arith.constant 0 : index
    %17 = vector.load %arg6[%c0_12, %c0_13] : memref<32x16xf32, #tpu.memory_space<vmem>>, vector<32x16xf32>
    %cst_14 = arith.constant dense<0.000000e+00> : vector<8x16xf32>
    %18 = tpu.matmul %16, %17, %cst_14 {dimension_numbers = #tpu.dot_dimension_numbers<[1], [0], [0], [1], [0, 0, 1, 1], [], []>} : vector<8x32xf32>, vector<32x16xf32>, vector<8x16xf32> -> vector<8x16xf32>
    %c0_15 = arith.constant 0 : index
    %c0_16 = arith.constant 0 : index
    %19 = vector.load %arg7[%c0_15, %c0_16] : memref<1x16xf32, #tpu.memory_space<vmem>>, vector<1x16xf32>
    %20 = vector.broadcast %19 : vector<1x16xf32> to vector<8x16xf32>
    %21 = arith.addf %18, %20 : vector<8x16xf32>
    %22 = tpu.iota {dimensions = array<i32: 1>} : vector<8x16xi32>
    %c8_i32 = arith.constant 8 : i32
    %23 = vector.broadcast %c8_i32 : i32 to vector<8x16xi32>
    %24 = arith.cmpi sge, %22, %23 : vector<8x16xi32>
    %25 = math.exp %21 : vector<8x16xf32>
    %26 = arith.select %24, %25, %21 : vector<8x16xi1>, vector<8x16xf32>
    %c0_17 = arith.constant 0 : index
    %c0_18 = arith.constant 0 : index
    %27 = vector.load %arg8[%c0_17, %c0_18] : memref<8x16xf32, #tpu.memory_space<vmem>>, vector<8x16xf32>
    tpu.vector_store %arg8[%c0_17, %c0_18], %26 {strides = array<i32>} : memref<8x16xf32, #tpu.memory_space<vmem>>, vector<8x16xf32>,
    return
  }
  func.func @transform_0(%arg0: i32) -> (i32, i32) {
    %c0_i32 = arith.constant 0 : i32
    %c0_i32_0 = arith.constant 0 : i32
    return %arg0, %c0_i32 : i32, i32
  }
  func.func @transform_1(%arg0: i32) -> (i32, i32) {
    %c0_i32 = arith.constant 0 : i32
    %c0_i32_0 = arith.constant 0 : i32
    %c0_i32_1 = arith.constant 0 : i32
    return %c0_i32, %c0_i32_0 : i32, i32
  }
  func.func @transform_2(%arg0: i32) -> (i32, i32) {
    %c0_i32 = arith.constant 0 : i32
    %c0_i32_0 = arith.constant 0 : i32
    %c0_i32_1 = arith.constant 0 : i32
    return %c0_i32, %c0_i32_0 : i32, i32
  }
  func.func @transform_3(%arg0: i32) -> (i32, i32) {
    %c0_i32 = arith.constant 0 : i32
    %c0_i32_0 = arith.constant 0 : i32
    %c0_i32_1 = arith.constant 0 : i32
    return %c0_i32, %c0_i32_0 : i32, i32
  }
  func.func @transform_4(%arg0: i32) -> (i32, i32) {
    %c0_i32 = arith.constant 0 : i32
    %c0_i32_0 = arith.constant 0 : i32
    %c0_i32_1 = arith.constant 0 : i32
    return %c0_i32, %c0_i32_0 : i32, i32
  }
  func.func @transform_5(%arg0: i32) -> (i32, i32) {
    %c0_i32 = arith.constant 0 : i32
    %c0_i32_0 = arith.constant 0 : i32
    %c0_i32_1 = arith.constant 0 : i32
    return %c0_i32, %c0_i32_0 : i32, i32
  }
  func.func @transform_6(%arg0: i32) -> (i32, i32) {
    %c0_i32 = arith.constant 0 : i32
    %c0_i32_0 = arith.constant 0 : i32
    %c0_i32_1 = arith.constant 0 : i32
    return %c0_i32, %c0_i32_0 : i32, i32
  }
  func.func @transform_7(%arg0: i32) -> (i32, i32) {
    %c0_i32 = arith.constant 0 : i32
    %c0_i32_0 = arith.constant 0 : i32
    return %arg0, %c0_i32 : i32, i32
  }
}

</mosaic_0001>

<llo_original>
// kernel: tpu_custom_call.1
$region0: #{tpu_custom_call.1}
  #allocation0 [shape = 'u32[]', space=smem, size = 0x4, offset = 0x4, fixed_abs, tag = 'smem constant byte address 0x4 - core index']
  #allocation1 [shape = 'u32[144,128]{1,0:T(1,128)}', space=vmem, size = 0x12000, scoped, tag = 'internal scratch']
  %s0 = inlined_call_operand.hbm [shape: f32[8,16], index: 0, kind: input, shape index: {}]
  %s1 = inlined_call_operand.vmem [shape: f32[16,32], index: 1, kind: input, shape index: {}]
  %s2 = inlined_call_operand.vmem [shape: f32[1,32], index: 2, kind: input, shape index: {}]
  %s3 = inlined_call_operand.vmem [shape: f32[32,32], index: 3, kind: input, shape index: {}]
  %s4 = inlined_call_operand.vmem [shape: f32[1,32], index: 4, kind: input, shape index: {}]
  %s5 = inlined_call_operand.vmem [shape: f32[32,16], index: 5, kind: input, shape index: {}]
  %s6 = inlined_call_operand.vmem [shape: f32[1,16], index: 6, kind: input, shape index: {}]
  %s7 = inlined_call_operand.hbm [shape: f32[8,16], index: 7, kind: output, shape index: {}]
  %s8 = sld [smem:[#allocation0]]
  $region42: #{tpu_custom_call.1} parent=0
    _
  %s10 = ssub.s32 1, %s8
  %s11 = scalar_select 0, %s10, %s8
  $region1: #{tpu_custom_call.1} parent=0
    #allocation2 [shape = 'u8[4096]{0}', space=vmem, size = 0x1000, scoped, tag = 'input window, operand 0, single buffered']
    #allocation3 [shape = 's32[1]{0}', space=sflag, size = 0x4, scoped, tag = 'scoped memory for tpu_custom_call.1']
    #allocation4 [shape = 's32[1]{0}', space=sflag, size = 0x4, scoped, tag = 'scoped memory for tpu_custom_call.1']
    #allocation5 [shape = 'u8[4096]{0}', space=vmem, size = 0x1000, scoped, tag = 'output window, operand 0, single buffered']
    %12 = vsyncpa [#allocation3], 0
    %13 = vsyncpa [#allocation4], 0
    // Predicated region
    $region2: #{tpu_custom_call.1} parent=1 // pred_check
      _
    $region3: #{tpu_custom_call.1} parent=1 // pred_check_branch
      %15 = sbr.rel (0) target = $region5
    $region4: #{tpu_custom_call.1} parent=1 // pred_region
      %s17 = ssub.s32 128, 128
      %18 = vsyncadd [#allocation3], %s17
      %s20 = sshll.u32 [#allocation2], 4
      %s21 = int_to_ptr.vmem [resolvable:$true] %s20
      %23 = dma.hbm_to_vmem [thread:$0]  %s0, 128, %s21, [#allocation3]
    $region5: #{tpu_custom_call.1} parent=1 // pred_fallthru
      _
    // Predicated region
    $region6: #{tpu_custom_call.1} parent=1 // pred_check
      _
    $region7: #{tpu_custom_call.1} parent=1 // pred_check_branch
      %25 = sbr.rel (0) target = $region9
    $region8: #{tpu_custom_call.1} parent=1 // pred_region
      _
    $region9: #{tpu_custom_call.1} parent=1 // pred_fallthru
      _
    // Predicated region
    $region10: #{tpu_custom_call.1} parent=1 // pred_check
      _
    $region11: #{tpu_custom_call.1} parent=1 // pred_check_branch
      %27 = sbr.rel (0) target = $region13
    $region12: #{tpu_custom_call.1} parent=1 // pred_region
      _
    $region13: #{tpu_custom_call.1} parent=1 // pred_fallthru
      _
    // Predicated region
    $region14: #{tpu_custom_call.1} parent=1 // pred_check
      _
    $region15: #{tpu_custom_call.1} parent=1 // pred_check_branch
      %29 = sbr.rel (0) target = $region17
    $region16: #{tpu_custom_call.1} parent=1 // pred_region
      _
    $region17: #{tpu_custom_call.1} parent=1 // pred_fallthru
      _
    // Predicated region
    $region18: #{tpu_custom_call.1} parent=1 // pred_check
      _
    $region19: #{tpu_custom_call.1} parent=1 // pred_check_branch
      %31 = sbr.rel (0) target = $region21
    $region20: #{tpu_custom_call.1} parent=1 // pred_region
      _
    $region21: #{tpu_custom_call.1} parent=1 // pred_fallthru
      _
    // Predicated region
    $region22: #{tpu_custom_call.1} parent=1 // pred_check
      _
    $region23: #{tpu_custom_call.1} parent=1 // pred_check_branch
      %33 = sbr.rel (0) target = $region25
    $region24: #{tpu_custom_call.1} parent=1 // pred_region
      _
    $region25: #{tpu_custom_call.1} parent=1 // pred_fallthru
      _
    // Predicated region
    $region26: #{tpu_custom_call.1} parent=1 // pred_check
      _
    $region27: #{tpu_custom_call.1} parent=1 // pred_check_branch
      %35 = sbr.rel (0) target = $region29
    $region28: #{tpu_custom_call.1} parent=1 // pred_region
      _
    $region29: #{tpu_custom_call.1} parent=1 // pred_fallthru
      _
    // Predicated region
    $region30: #{tpu_custom_call.1} parent=1 // pred_check
      _
    $region31: #{tpu_custom_call.1} parent=1 // pred_check_branch
      %37 = sbr.rel (0) target = $region33
    $region32: #{tpu_custom_call.1} parent=1 // pred_region
      %38 = dma.done [#allocation3], 128
    $region33: #{tpu_custom_call.1} parent=1 // pred_fallthru
      _
    %v39 = vld [vmem:[#allocation2] sm:$0xff]
    %v40 = vld [vmem:[%s1] sm:$0xff]
    %v41 = vld [vmem:[%s1 + $0x8] sm:$0xff]
    %v42 = vld [vmem:[%s2] sm:$0x1]
    %v44 = vlaneseq
    %v45 = vshrl.u32 %v44, 7
    %v46 = vsub.s32 0, %v45
    %v47 = vrot.slane %v42, %v46
    %vm49 = vcmask 130048
    %v51 = vsel %vm49, %v39, 0
    %53 = vmatprep.subr.mxu0 0.0
    %54 = vmatpush1.msra.mxu0 %v40
    %55 = vmatprep.subr.mxu0 0.0
    %56 = vmatpush1.msra.mxu0 %v41
    %57 = vmatprep.subr.mxu0 0.0
    %58 = vmatpush1.msra.mxu0 0.0
    %59 = vmatprep.subr.mxu0 0.0
    %60 = vmatpush1.msra.mxu0 0.0
    %61 = vmatprep.subr.mxu0 0.0
    %62 = vmatpush1.msra.mxu0 0.0
    %63 = vmatprep.subr.mxu0 0.0
    %64 = vmatpush1.msra.mxu0 0.0
    %65 = vmatprep.subr.mxu0 0.0
    %66 = vmatpush1.msra.mxu0 0.0
    %67 = vmatprep.subr.mxu0 0.0
    %68 = vmatpush1.msra.mxu0 0.0
    %69 = vmatprep.subr.mxu0 0.0
    %70 = vmatpush1.msra.mxu0 0.0
    %71 = vmatprep.subr.mxu0 0.0
    %72 = vmatpush1.msra.mxu0 0.0
    %73 = vmatprep.subr.mxu0 0.0
    %74 = vmatpush1.msra.mxu0 0.0
    %75 = vmatprep.subr.mxu0 0.0
    %76 = vmatpush1.msra.mxu0 0.0
    %77 = vmatprep.subr.mxu0 0.0
    %78 = vmatpush1.msra.mxu0 0.0
    %79 = vmatprep.subr.mxu0 0.0
    %80 = vmatpush1.msra.mxu0 0.0
    %81 = vmatprep.subr.mxu0 0.0
    %82 = vmatpush1.msra.mxu0 0.0
    %83 = vmatprep.subr.mxu0 0.0
    %84 = vmatpush1.msra.mxu0 0.0
    %85 = vmatprep.subr.mxu0 0.0
    %86 = vmatpush1.msra.mxu0 0.0
    %87 = vmatprep.subr.mxu0 0.0
    %88 = vmatpush1.msra.mxu0 0.0
    %89 = vmatprep.subr.mxu0 0.0
    %90 = vmatpush1.msra.mxu0 0.0
    %91 = vmatprep.subr.mxu0 0.0
    %92 = vmatpush1.msra.mxu0 0.0
    %93 = vmatprep.subr.mxu0 0.0
    %94 = vmatpush1.msra.mxu0 0.0
    %95 = vmatprep.subr.mxu0 0.0
    %96 = vmatpush1.msra.mxu0 0.0
    %97 = vmatprep.subr.mxu0 0.0
    %98 = vmatpush1.msra.mxu0 0.0
    %99 = vmatprep.subr.mxu0 0.0
    %100 = vmatpush1.msra.mxu0 0.0
    %101 = vmatprep.subr.mxu0 0.0
    %102 = vmatpush1.msra.mxu0 0.0
    %103 = vmatprep.subr.mxu0 0.0
    %104 = vmatpush1.msra.mxu0 0.0
    %105 = vmatprep.subr.mxu0 0.0
    %106 = vmatpush1.msra.mxu0 0.0
    %107 = vmatprep.subr.mxu0 0.0
    %108 = vmatpush1.msra.mxu0 0.0
    %109 = vmatprep.subr.mxu0 0.0
    %110 = vmatpush1.msra.mxu0 0.0
    %111 = vmatprep.subr.mxu0 0.0
    %112 = vmatpush1.msra.mxu0 0.0
    %113 = vmatprep.subr.mxu0 0.0
    %114 = vmatpush1.msra.mxu0 0.0
    %115 = vmatprep.subr.mxu0 0.0
    %116 = vmatpush1.msra.mxu0 0.0
    %117 = vmatprep.mubr.f32.mxu0 0.0
    %118 = vmatmul.mubr.f32.gmra.mrb[0].mxu0 %v51
    %v119 = vpop.f32.mrb[0].mxu0
    %v120 = vadd.f32 %v47, %v119
    %v121 = vpop.f32.mrb[0].mxu0
    %122 = vdwg.mxu0
    %v123 = vmul.f32 %v120, 0.01
    %v124 = vmax.f32 %v120, %v123
    %v125 = vld [vmem:[%s3] sm:$0xff]
    %v126 = vld [vmem:[%s3 + $0x8] sm:$0xff]
    %v127 = vld [vmem:[%s3 + $0x10] sm:$0xff]
    %v128 = vld [vmem:[%s3 + $0x18] sm:$0xff]
    %v129 = vld [vmem:[%s4] sm:$0x1]
    %v131 = vlaneseq
    %v132 = vshrl.u32 %v131, 7
    %v133 = vsub.s32 0, %v132
    %v134 = vrot.slane %v129, %v133
    %vm136 = vcmask 261120
    %v138 = vsel %vm136, %v124, 0
    %140 = vmatprep.subr.mxu0 0.0
    %141 = vmatpush1.msra.mxu0 %v125
    %142 = vmatprep.subr.mxu0 0.0
    %143 = vmatpush1.msra.mxu0 %v126
    %144 = vmatprep.subr.mxu0 0.0
    %145 = vmatpush1.msra.mxu0 %v127
    %146 = vmatprep.subr.mxu0 0.0
    %147 = vmatpush1.msra.mxu0 %v128
    %148 = vmatprep.subr.mxu0 0.0
    %149 = vmatpush1.msra.mxu0 0.0
    %150 = vmatprep.subr.mxu0 0.0
    %151 = vmatpush1.msra.mxu0 0.0
    %152 = vmatprep.subr.mxu0 0.0
    %153 = vmatpush1.msra.mxu0 0.0
    %154 = vmatprep.subr.mxu0 0.0
    %155 = vmatpush1.msra.mxu0 0.0
    %156 = vmatprep.subr.mxu0 0.0
    %157 = vmatpush1.msra.mxu0 0.0
    %158 = vmatprep.subr.mxu0 0.0
    %159 = vmatpush1.msra.mxu0 0.0
    %160 = vmatprep.subr.mxu0 0.0
    %161 = vmatpush1.msra.mxu0 0.0
    %162 = vmatprep.subr.mxu0 0.0
    %163 = vmatpush1.msra.mxu0 0.0
    %164 = vmatprep.subr.mxu0 0.0
    %165 = vmatpush1.msra.mxu0 0.0
    %166 = vmatprep.subr.mxu0 0.0
    %167 = vmatpush1.msra.mxu0 0.0
    %168 = vmatprep.subr.mxu0 0.0
    %169 = vmatpush1.msra.mxu0 0.0
    %170 = vmatprep.subr.mxu0 0.0
    %171 = vmatpush1.msra.mxu0 0.0
    %172 = vmatprep.subr.mxu0 0.0
    %173 = vmatpush1.msra.mxu0 0.0
    %174 = vmatprep.subr.mxu0 0.0
    %175 = vmatpush1.msra.mxu0 0.0
    %176 = vmatprep.subr.mxu0 0.0
    %177 = vmatpush1.msra.mxu0 0.0
    %178 = vmatprep.subr.mxu0 0.0
    %179 = vmatpush1.msra.mxu0 0.0
    %180 = vmatprep.subr.mxu0 0.0
    %181 = vmatpush1.msra.mxu0 0.0
    %182 = vmatprep.subr.mxu0 0.0
    %183 = vmatpush1.msra.mxu0 0.0
    %184 = vmatprep.subr.mxu0 0.0
    %185 = vmatpush1.msra.mxu0 0.0
    %186 = vmatprep.subr.mxu0 0.0
    %187 = vmatpush1.msra.mxu0 0.0
    %188 = vmatprep.subr.mxu0 0.0
    %189 = vmatpush1.msra.mxu0 0.0
    %190 = vmatprep.subr.mxu0 0.0
    %191 = vmatpush1.msra.mxu0 0.0
    %192 = vmatprep.subr.mxu0 0.0
    %193 = vmatpush1.msra.mxu0 0.0
    %194 = vmatprep.subr.mxu0 0.0
    %195 = vmatpush1.msra.mxu0 0.0
    %196 = vmatprep.subr.mxu0 0.0
    %197 = vmatpush1.msra.mxu0 0.0
    %198 = vmatprep.subr.mxu0 0.0
    %199 = vmatpush1.msra.mxu0 0.0
    %200 = vmatprep.subr.mxu0 0.0
    %201 = vmatpush1.msra.mxu0 0.0
    %202 = vmatprep.subr.mxu0 0.0
    %203 = vmatpush1.msra.mxu0 0.0
    %204 = vmatprep.mubr.f32.mxu0 0.0
    %205 = vmatmul.mubr.f32.gmra.mrb[0].mxu0 %v138
    %v206 = vpop.f32.mrb[0].mxu0
    %v207 = vadd.f32 %v134, %v206
    %v208 = vpop.f32.mrb[0].mxu0
    %209 = vdwg.mxu0
    %v210 = vmul.f32 %v207, 0.01
    %v211 = vmax.f32 %v207, %v210
    %v212 = vld [vmem:[%s5] sm:$0xff]
    %v213 = vld [vmem:[%s5 + $0x8] sm:$0xff]
    %v214 = vld [vmem:[%s5 + $0x10] sm:$0xff]
    %v215 = vld [vmem:[%s5 + $0x18] sm:$0xff]
    %v216 = vld [vmem:[%s6] sm:$0x1]
    %v218 = vlaneseq
    %v219 = vshrl.u32 %v218, 7
    %v220 = vsub.s32 0, %v219
    %v221 = vrot.slane %v216, %v220
    %v224 = vsel %vm136, %v211, 0
    %226 = vmatprep.subr.mxu0 0.0
    %227 = vmatpush1.msra.mxu0 %v212
    %228 = vmatprep.subr.mxu0 0.0
    %229 = vmatpush1.msra.mxu0 %v213
    %230 = vmatprep.subr.mxu0 0.0
    %231 = vmatpush1.msra.mxu0 %v214
    %232 = vmatprep.subr.mxu0 0.0
    %233 = vmatpush1.msra.mxu0 %v215
    %234 = vmatprep.subr.mxu0 0.0
    %235 = vmatpush1.msra.mxu0 0.0
    %236 = vmatprep.subr.mxu0 0.0
    %237 = vmatpush1.msra.mxu0 0.0
    %238 = vmatprep.subr.mxu0 0.0
    %239 = vmatpush1.msra.mxu0 0.0
    %240 = vmatprep.subr.mxu0 0.0
    %241 = vmatpush1.msra.mxu0 0.0
    %242 = vmatprep.subr.mxu0 0.0
    %243 = vmatpush1.msra.mxu0 0.0
    %244 = vmatprep.subr.mxu0 0.0
    %245 = vmatpush1.msra.mxu0 0.0
    %246 = vmatprep.subr.mxu0 0.0
    %247 = vmatpush1.msra.mxu0 0.0
    %248 = vmatprep.subr.mxu0 0.0
    %249 = vmatpush1.msra.mxu0 0.0
    %250 = vmatprep.subr.mxu0 0.0
    %251 = vmatpush1.msra.mxu0 0.0
    %252 = vmatprep.subr.mxu0 0.0
    %253 = vmatpush1.msra.mxu0 0.0
    %254 = vmatprep.subr.mxu0 0.0
    %255 = vmatpush1.msra.mxu0 0.0
    %256 = vmatprep.subr.mxu0 0.0
    %257 = vmatpush1.msra.mxu0 0.0
    %258 = vmatprep.subr.mxu0 0.0
    %259 = vmatpush1.msra.mxu0 0.0
    %260 = vmatprep.subr.mxu0 0.0
    %261 = vmatpush1.msra.mxu0 0.0
    %262 = vmatprep.subr.mxu0 0.0
    %263 = vmatpush1.msra.mxu0 0.0
    %264 = vmatprep.subr.mxu0 0.0
    %265 = vmatpush1.msra.mxu0 0.0
    %266 = vmatprep.subr.mxu0 0.0
    %267 = vmatpush1.msra.mxu0 0.0
    %268 = vmatprep.subr.mxu0 0.0
    %269 = vmatpush1.msra.mxu0 0.0
    %270 = vmatprep.subr.mxu0 0.0
    %271 = vmatpush1.msra.mxu0 0.0
    %272 = vmatprep.subr.mxu0 0.0
    %273 = vmatpush1.msra.mxu0 0.0
    %274 = vmatprep.subr.mxu0 0.0
    %275 = vmatpush1.msra.mxu0 0.0
    %276 = vmatprep.subr.mxu0 0.0
    %277 = vmatpush1.msra.mxu0 0.0
    %278 = vmatprep.subr.mxu0 0.0
    %279 = vmatpush1.msra.mxu0 0.0
    %280 = vmatprep.subr.mxu0 0.0
    %281 = vmatpush1.msra.mxu0 0.0
    %282 = vmatprep.subr.mxu0 0.0
    %283 = vmatpush1.msra.mxu0 0.0
    %284 = vmatprep.subr.mxu0 0.0
    %285 = vmatpush1.msra.mxu0 0.0
    %286 = vmatprep.subr.mxu0 0.0
    %287 = vmatpush1.msra.mxu0 0.0
    %288 = vmatprep.subr.mxu0 0.0
    %289 = vmatpush1.msra.mxu0 0.0
    %290 = vmatprep.mubr.f32.mxu0 0.0
    %291 = vmatmul.mubr.f32.gmra.mrb[0].mxu0 %v224
    %v292 = vpop.f32.mrb[0].mxu0
    %v293 = vadd.f32 %v221, %v292
    %v294 = vpop.f32.mrb[0].mxu0
    %295 = vdwg.mxu0
    %v296 = vlaneseq
    %v297 = vand.u32 %v296, 127
    %vm298 = vcmp.ge.s32.totalorder %v297, 8
    %v299 = vmul.f32 %v293, 1.442695
    %v300 = vpow.pop %v299
    %v301 = vsel %vm298, %v300, %v293
    %302 = vst.msk [vmem:[#allocation5] sm:$0xff] %vm49, %v301
    // Predicated region
    $region34: #{tpu_custom_call.1} parent=1 // pred_check
      _
    $region35: #{tpu_custom_call.1} parent=1 // pred_check_branch
      %304 = sbr.rel (0) target = $region37
    $region36: #{tpu_custom_call.1} parent=1 // pred_region
      %s306 = ssub.s32 128, 128
      %307 = vsyncadd [#allocation4], %s306
      %s309 = sshll.u32 [#allocation5], 4
      %s310 = int_to_ptr.vmem [resolvable:$true] %s309
      %312 = dma.vmem_to_hbm [thread:$0]  %s310, 128, %s7, [#allocation4]
    $region37: #{tpu_custom_call.1} parent=1 // pred_fallthru
      _
    // Predicated region
    $region38: #{tpu_custom_call.1} parent=1 // pred_check
      _
    $region39: #{tpu_custom_call.1} parent=1 // pred_check_branch
      %314 = sbr.rel (0) target = $region41
    $region40: #{tpu_custom_call.1} parent=1 // pred_region
      %315 = dma.done [#allocation4], 128
    $region41: #{tpu_custom_call.1} parent=1 // pred_fallthru
      _
    %316 = vsyncpa [#allocation3], 1
    %317 = vsyncpa [#allocation4], 1

</llo_original>
